<compile_context>
chip_gen: v6e
topology: v6e:2x2x1
jax: 0.10.0
libtpu: 0.0.40
codegen_flags: <defaults>
</compile_context>

<pallas_src>
import functools
import math

import jax
import jax.numpy as jnp
from jax.experimental import pallas as pl
from jax.experimental.pallas import tpu as pltpu


# ----------------------------------------------------------------------------
# Pallas kernel: whole forward hot path for one batch tile
# ----------------------------------------------------------------------------
def _fa_autoencoder_kernel(
    xf_ref, xs_ref, m_ref, u_ref,            # (TB,Fa) bf16, (TB,E) bf16, (TB,1) f32, (TB,C) f32
    w0f_ref, w0s_ref, b0_ref,                 # shared Linear (BN folded), split row-wise
    w1_ref, b1_ref,                           # combined layer 1 (BN folded)
    w2_ref, b2_ref,                           # combined layer 2 (BN folded)
    wo_ref, bo_ref,                           # output Linear -> num_classes
    f_ref,                                    # F: (C, Fa) f32
    d_ref, g_ref, v_ref,                      # outputs: (TB,C), (TB,C), (TB,Fa) f32
    *, inv_tau,                               # static 1/tau
):
    m = m_ref[...]                            # (TB, 1) binary float mask

    # --- layer 0: split-input dot (concat eliminated), bf16 operands / f32 accum ---
    h = (jnp.dot(xf_ref[...], w0f_ref[...], preferred_element_type=jnp.float32)
         + jnp.dot(xs_ref[...], w0s_ref[...], preferred_element_type=jnp.float32)
         + b0_ref[...])
    h = jnp.maximum(h, 0.0)

    # --- layers 1 & 2 (BatchNorm folded into W/b, dropout = identity) ---
    h = jnp.maximum(
        jnp.dot(h.astype(jnp.bfloat16), w1_ref[...],
                preferred_element_type=jnp.float32) + b1_ref[...], 0.0)
    h = jnp.maximum(
        jnp.dot(h.astype(jnp.bfloat16), w2_ref[...],
                preferred_element_type=jnp.float32) + b2_ref[...], 0.0)

    # --- logits + masking ---
    logits = (jnp.dot(h.astype(jnp.bfloat16), wo_ref[...],
                      preferred_element_type=jnp.float32) + bo_ref[...])
    logits = logits * m + (1.0 - m) * 1e-10

    # --- d = softmax(logits) * mask (exact f32 normalization) ---
    z = logits - jnp.max(logits, axis=-1, keepdims=True)
    ez = jnp.exp(z)
    d = ez / jnp.sum(ez, axis=-1, keepdims=True) * m

    # --- Gumbel(0,1) from streamed uniform noise (logs hit the EUP slot) ---
    gnoise = -jnp.log(-jnp.log(u_ref[...] + 1e-20) + 1e-20)

    # --- g = softmax((d + noise) / tau) * mask ---
    y = (d + gnoise) * inv_tau
    zy = y - jnp.max(y, axis=-1, keepdims=True)
    ey = jnp.exp(zy)
    g = ey / jnp.sum(ey, axis=-1, keepdims=True) * m

    # --- outputs written directly (no packed slab / no wrapper re-slice) ---
    d_ref[...] = d
    g_ref[...] = g
    v_ref[...] = jnp.dot(g, f_ref[...], preferred_element_type=jnp.float32) * m


# ----------------------------------------------------------------------------
# Wrapper helpers
# ----------------------------------------------------------------------------
def _fold_linear_bn(w, b, bn, eps=1e-5):
    """Fold eval-mode BatchNorm1d into the preceding Linear: y = x @ W' + b'."""
    gamma, beta, mean, var = bn
    s = gamma / jnp.sqrt(var + eps)
    return w * s[None, :], (b - mean) * s + beta


def _pick_tile_b(batch, stream_bytes_2buf, vmem_budget_bytes=16 * 1024 * 1024,
                 max_tile=4096, min_tiles=2):
    """VMEM-budget-driven batch tile, multiple of 8, with >=2 grid steps (v7x dual TC)."""
    b8 = ((batch + 7) // 8) * 8
    cap = (vmem_budget_bytes // max(stream_bytes_2buf, 1)) // 8 * 8
    cap = max(8, min(cap, max_tile))
    if b8 > 8:
        cap = min(cap, max(8, (b8 // min_tiles) // 8 * 8))
    # Prefer a tile that divides the (8-rounded) batch exactly -> no padding and no
    # output re-slice copy, as long as it stays within 2x of the VMEM-optimal tile.
    for t in range(cap, max(7, cap // 2), -8):
        if b8 % t == 0:
            return t
    return cap


# ----------------------------------------------------------------------------
# Forward wrapper: BN folding, bf16 operand prep, tiling, pallas_call
# ----------------------------------------------------------------------------
def frameaxis_autoencoder_forward(params, v_frameaxis, v_sentence, mask, tau, noise_key):
    B, Fa = v_frameaxis.shape
    E = v_sentence.shape[1]
    H = params["w1"].shape[0]
    C = params["F"].shape[0]

    # Fold eval-mode BN into the linears.
    w0, b0 = _fold_linear_bn(params["w_shared"], params["b_shared"], params["bn0"])
    w1, b1 = _fold_linear_bn(params["w1"], params["b1"], params["bn1"])
    w2, b2 = _fold_linear_bn(params["w2"], params["b2"], params["bn2"])
    wo, bo = params["w_out"], params["b_out"]

    # Split shared weight row-wise so [v_frameaxis ; v_sentence] never materializes.
    w0f, w0s = w0[:Fa], w0[Fa:]

    # MXU operands as bf16; accumulation & all elementwise math stay f32.
    bf = jnp.bfloat16
    xf = v_frameaxis.astype(bf)
    xs = v_sentence.astype(bf)
    w0f, w0s, w1, w2, wo = (a.astype(bf) for a in (w0f, w0s, w1, w2, wo))
    b0, b1, b2, bo = (a.astype(jnp.float32)[None, :] for a in (b0, b1, b2, bo))
    F_param = params["F"].astype(jnp.float32)

    m2 = mask.reshape(B, 1).astype(jnp.float32)
    # Uniform noise for Gumbel(0,1) (torch.rand in the original forward).
    # TODO(synk): in-kernel pltpu.prng_* would remove this (B,C) stream but has no
    # interpret-mode lowering, so noise is generated host-side with jax.random.
    u = jax.random.uniform(noise_key, (B, C), jnp.float32)

    # Per-row HBM/VMEM stream bytes (inputs + outputs), x2 for double buffering.
    row_in_bytes = Fa * 2 + E * 2 + 1 * 4 + C * 4
    row_out_bytes = 2 * C * 4 + Fa * 4
    stream_bytes_2buf = 2 * (row_in_bytes + row_out_bytes)

    tile_b = _pick_tile_b(B, stream_bytes_2buf)
    B_pad = ((B + tile_b - 1) // tile_b) * tile_b
    if B_pad != B:
        pad = ((0, B_pad - B), (0, 0))
        xf, xs, m2, u = (jnp.pad(a, pad) for a in (xf, xs, m2, u))
    nb = B_pad // tile_b

    tile_map = lambda i: (i, 0)
    const_map = lambda i: (0, 0)

    in_specs = [
        pl.BlockSpec((tile_b, Fa), tile_map),       # v_frameaxis tile (bf16)
        pl.BlockSpec((tile_b, E), tile_map),        # v_sentence tile (bf16)
        pl.BlockSpec((tile_b, 1), tile_map),        # mask tile
        pl.BlockSpec((tile_b, C), tile_map),        # uniform noise tile
        # grid-invariant params (VMEM-resident across steps):
        pl.BlockSpec((Fa, H), const_map),           # w0 (frameaxis rows)
        pl.BlockSpec((E, H), const_map),            # w0 (sentence rows)
        pl.BlockSpec((1, H), const_map),            # b0
        pl.BlockSpec((H, H), const_map),            # w1
        pl.BlockSpec((1, H), const_map),            # b1
        pl.BlockSpec((H, H), const_map),            # w2
        pl.BlockSpec((1, H), const_map),            # b2
        pl.BlockSpec((H, C), const_map),            # w_out
        pl.BlockSpec((1, C), const_map),            # b_out
        pl.BlockSpec((C, Fa), const_map),           # F
    ]
    out_specs = (
        pl.BlockSpec((tile_b, C), tile_map),        # d
        pl.BlockSpec((tile_b, C), tile_map),        # g
        pl.BlockSpec((tile_b, Fa), tile_map),       # vhat
    )
    out_shape = (
        jax.ShapeDtypeStruct((B_pad, C), jnp.float32),
        jax.ShapeDtypeStruct((B_pad, C), jnp.float32),
        jax.ShapeDtypeStruct((B_pad, Fa), jnp.float32),
    )

    param_bytes = sum(int(a.size) * a.dtype.itemsize
                      for a in (w0f, w0s, w1, w2, wo, b0, b1, b2, bo, F_param))
    flops = 2 * B_pad * ((Fa + E) * H + 2 * H * H + H * C + C * Fa)
    transcendentals = 4 * B_pad * C                     # 2 exps + 2 logs per class elem
    bytes_accessed = B_pad * (row_in_bytes + row_out_bytes) + param_bytes
    vmem_limit = int(min(48 * 1024 * 1024,
                         max(24 * 1024 * 1024,
                             2 * param_bytes + tile_b * stream_bytes_2buf + (4 << 20))))

    kernel = functools.partial(_fa_autoencoder_kernel, inv_tau=1.0 / float(tau))

    d_pad, g_pad, v_pad = pl.pallas_call(
        kernel,
        out_shape=out_shape,
        grid=(nb,),
        in_specs=in_specs,
        out_specs=out_specs,
        compiler_params=pltpu.CompilerParams(
            dimension_semantics=("parallel",),
            vmem_limit_bytes=vmem_limit),
        cost_estimate=pl.CostEstimate(
            flops=int(flops),
            transcendentals=int(transcendentals),
            bytes_accessed=int(bytes_accessed)),
    )(xf, xs, m2, u, w0f, w0s, b0, w1, b1, w2, b2, wo, bo, F_param)

    if B_pad != B:
        d_pad, g_pad, v_pad = d_pad[:B], g_pad[:B], v_pad[:B]
    return {"vhat": v_pad, "d": d_pad, "g": g_pad, "F": params["F"]}


# ----------------------------------------------------------------------------
# Deterministic parameter init (matches module __init__ shapes)
# ----------------------------------------------------------------------------
def init_params(key, embedding_dim, frameaxis_dim, hidden_dim, num_classes):
    input_dim = embedding_dim + frameaxis_dim
    keys = jax.random.split(key, 10)

    def linear(kw, kb, fan_in, fan_out):
        bound = 1.0 / math.sqrt(fan_in)
        w = jax.random.uniform(kw, (fan_in, fan_out), jnp.float32, -bound, bound)
        b = jax.random.uniform(kb, (fan_out,), jnp.float32, -bound, bound)
        return w, b

    def bn(dim):
        return (jnp.ones((dim,), jnp.float32),    # gamma
                jnp.zeros((dim,), jnp.float32),   # beta
                jnp.zeros((dim,), jnp.float32),   # running_mean
                jnp.ones((dim,), jnp.float32))    # running_var

    w_shared, b_shared = linear(keys[0], keys[1], input_dim, hidden_dim)
    w1, b1 = linear(keys[2], keys[3], hidden_dim, hidden_dim)
    w2, b2 = linear(keys[4], keys[5], hidden_dim, hidden_dim)
    w_out, b_out = linear(keys[6], keys[7], hidden_dim, num_classes)

    # F: xavier_uniform with relu gain
    gain = math.sqrt(2.0)
    bound_f = gain * math.sqrt(6.0 / (num_classes + frameaxis_dim))
    F_param = jax.random.uniform(keys[8], (num_classes, frameaxis_dim),
                                 jnp.float32, -bound_f, bound_f)

    return {
        "w_shared": w_shared, "b_shared": b_shared, "bn0": bn(hidden_dim),
        "w1": w1, "b1": b1, "bn1": bn(hidden_dim),
        "w2": w2, "b2": b2, "bn2": bn(hidden_dim),
        "w_out": w_out, "b_out": b_out,
        "F": F_param,
    }


# ----------------------------------------------------------------------------
# Pure-JAX f32 reference for the noise-independent part (d)
# ----------------------------------------------------------------------------
def reference_d(params, v_frameaxis, v_sentence, mask, eps=1e-5):
    m = mask.reshape(-1, 1).astype(jnp.float32)
    x = jnp.concatenate([v_frameaxis, v_sentence], axis=-1)

    def bn_apply(h, bn):
        gamma, beta, mean, var = bn
        s = gamma / jnp.sqrt(var + eps)
        return (h - mean) * s + beta

    h = jax.nn.relu(bn_apply(x @ params["w_shared"] + params["b_shared"], params["bn0"]))
    h = jax.nn.relu(bn_apply(h @ params["w1"] + params["b1"], params["bn1"]))
    h = jax.nn.relu(bn_apply(h @ params["w2"] + params["b2"], params["bn2"]))
    logits = h @ params["w_out"] + params["b_out"]
    logits = logits * m + (1.0 - m) * 1e-10
    return jax.nn.softmax(logits, axis=-1) * m


# ----------------------------------------------------------------------------
if __name__ == "__main__":
    B, embedding_dim, frameaxis_dim, hidden_dim, num_classes = 24, 32, 16, 32, 8
    tau = 0.7

    key = jax.random.PRNGKey(0)
    k_par, k_vf, k_vs, k_mask, k_noise = jax.random.split(key, 5)

    params = init_params(k_par, embedding_dim, frameaxis_dim, hidden_dim, num_classes)

    v_frameaxis = jax.random.normal(k_vf, (B, frameaxis_dim), jnp.float32)
    v_sentence = jax.random.normal(k_vs, (B, embedding_dim), jnp.float32)
    mask = (jax.random.uniform(k_mask, (B,)) > 0.3).astype(jnp.float32)

    out = frameaxis_autoencoder_forward(params, v_frameaxis, v_sentence,
                                        mask, tau, k_noise)
    jax.block_until_ready(out)

    m2 = mask.reshape(-1, 1)

    # d is noise-independent -> compare against the pure-f32 reference
    # (tolerance covers bf16 MXU operand streaming + folded eval-mode BN).
    d_ref = reference_d(params, v_frameaxis, v_sentence, mask)
    assert jnp.allclose(out["d"], d_ref, atol=2e-2, rtol=2e-2), "d mismatch"

    # g: reconstruct the same uniform/Gumbel noise and check consistency with the
    # kernel's own d (isolates the softmax/Gumbel path from bf16 matmul rounding).
    u_chk = jax.random.uniform(k_noise, (B, num_classes), jnp.float32)
    gum = -jnp.log(-jnp.log(u_chk + 1e-20) + 1e-20)
    g_chk = jax.nn.softmax((out["d"] + gum) / tau, axis=-1) * m2
    assert jnp.allclose(out["g"], g_chk, atol=1e-3, rtol=1e-3), "g mismatch"
    assert bool(jnp.all(out["g"] >= 0.0)), "g has negative entries"
    assert jnp.allclose(jnp.sum(out["g"], axis=-1, keepdims=True), m2,
                        atol=1e-3), "g rows do not sum to mask"

    # vhat must be consistent with the returned g: vhat = (g @ F) * mask
    vhat_chk = (out["g"] @ params["F"]) * m2
    assert jnp.allclose(out["vhat"], vhat_chk, atol=1e-4, rtol=1e-4), "vhat mismatch"

    # masked rows are fully zeroed
    zero_rows = mask == 0.0
    assert bool(jnp.all(out["d"][zero_rows] == 0.0))
    assert bool(jnp.all(out["g"][zero_rows] == 0.0))
    assert bool(jnp.all(out["vhat"][zero_rows] == 0.0))

    print("KERNEL_OK")
</pallas_src>

<mosaic_0001>
module attributes {stable_mosaic.version = 11 : i64} {
  func.func @_fa_autoencoder_kernel(%arg0: i32, %arg1: memref<8x16xbf16, #tpu.memory_space<vmem>>, %arg2: memref<8x32xbf16, #tpu.memory_space<vmem>>, %arg3: memref<8x1xf32, #tpu.memory_space<vmem>>, %arg4: memref<8x8xf32, #tpu.memory_space<vmem>>, %arg5: memref<16x32xbf16, #tpu.memory_space<vmem>>, %arg6: memref<32x32xbf16, #tpu.memory_space<vmem>>, %arg7: memref<1x32xf32, #tpu.memory_space<vmem>>, %arg8: memref<32x32xbf16, #tpu.memory_space<vmem>>, %arg9: memref<1x32xf32, #tpu.memory_space<vmem>>, %arg10: memref<32x32xbf16, #tpu.memory_space<vmem>>, %arg11: memref<1x32xf32, #tpu.memory_space<vmem>>, %arg12: memref<32x8xbf16, #tpu.memory_space<vmem>>, %arg13: memref<1x8xf32, #tpu.memory_space<vmem>>, %arg14: memref<8x16xf32, #tpu.memory_space<vmem>>, %arg15: memref<8x8xf32, #tpu.memory_space<vmem>>, %arg16: memref<8x8xf32, #tpu.memory_space<vmem>>, %arg17: memref<8x16xf32, #tpu.memory_space<vmem>>) attributes {dimension_semantics = [#tpu.dimension_semantics<parallel>], iteration_bounds = array<i64: 3>, scalar_prefetch = 0 : i64, scratch_operands = 0 : i64, tpu.core_type = #tpu.core_type<tc>, window_params = [{transform_indices = @transform_0, window_bounds = array<i64: 8, 16>}, {transform_indices = @transform_1, window_bounds = array<i64: 8, 32>}, {transform_indices = @transform_2, window_bounds = array<i64: 8, 1>}, {transform_indices = @transform_3, window_bounds = array<i64: 8, 8>}, {pipeline_mode = #tpu.pipeline_mode<synchronous>, transform_indices = @transform_4, window_bounds = array<i64: 16, 32>}, {pipeline_mode = #tpu.pipeline_mode<synchronous>, transform_indices = @transform_5, window_bounds = array<i64: 32, 32>}, {pipeline_mode = #tpu.pipeline_mode<synchronous>, transform_indices = @transform_6, window_bounds = array<i64: 1, 32>}, {pipeline_mode = #tpu.pipeline_mode<synchronous>, transform_indices = @transform_7, window_bounds = array<i64: 32, 32>}, {pipeline_mode = #tpu.pipeline_mode<synchronous>, transform_indices = @transform_8, window_bounds = array<i64: 1, 32>}, {pipeline_mode = #tpu.pipeline_mode<synchronous>, transform_indices = @transform_9, window_bounds = array<i64: 32, 32>}, {pipeline_mode = #tpu.pipeline_mode<synchronous>, transform_indices = @transform_10, window_bounds = array<i64: 1, 32>}, {pipeline_mode = #tpu.pipeline_mode<synchronous>, transform_indices = @transform_11, window_bounds = array<i64: 32, 8>}, {pipeline_mode = #tpu.pipeline_mode<synchronous>, transform_indices = @transform_12, window_bounds = array<i64: 1, 8>}, {pipeline_mode = #tpu.pipeline_mode<synchronous>, transform_indices = @transform_13, window_bounds = array<i64: 8, 16>}, {transform_indices = @transform_14, window_bounds = array<i64: 8, 8>}, {transform_indices = @transform_15, window_bounds = array<i64: 8, 8>}, {transform_indices = @transform_16, window_bounds = array<i64: 8, 16>}]} {
    %c0 = arith.constant 0 : index
    %c0_0 = arith.constant 0 : index
    %0 = vector.load %arg3[%c0, %c0_0] : memref<8x1xf32, #tpu.memory_space<vmem>>, vector<8x1xf32>
    %c0_1 = arith.constant 0 : index
    %c0_2 = arith.constant 0 : index
    %1 = vector.load %arg1[%c0_1, %c0_2] : memref<8x16xbf16, #tpu.memory_space<vmem>>, vector<8x16xbf16>
    %c0_3 = arith.constant 0 : index
    %c0_4 = arith.constant 0 : index
    %2 = vector.load %arg5[%c0_3, %c0_4] : memref<16x32xbf16, #tpu.memory_space<vmem>>, vector<16x32xbf16>
    %cst = arith.constant dense<0.000000e+00> : vector<8x32xf32>
    %3 = tpu.matmul %1, %2, %cst {dimension_numbers = #tpu.dot_dimension_numbers<[1], [0], [0], [1], [0, 0, 1, 1], [], []>} : vector<8x16xbf16>, vector<16x32xbf16>, vector<8x32xf32> -> vector<8x32xf32>
    %c0_5 = arith.constant 0 : index
    %c0_6 = arith.constant 0 : index
    %4 = vector.load %arg2[%c0_5, %c0_6] : memref<8x32xbf16, #tpu.memory_space<vmem>>, vector<8x32xbf16>
    %c0_7 = arith.constant 0 : index
    %c0_8 = arith.constant 0 : index
    %5 = vector.load %arg6[%c0_7, %c0_8] : memref<32x32xbf16, #tpu.memory_space<vmem>>, vector<32x32xbf16>
    %cst_9 = arith.constant dense<0.000000e+00> : vector<8x32xf32>
    %6 = tpu.matmul %4, %5, %cst_9 {dimension_numbers = #tpu.dot_dimension_numbers<[1], [0], [0], [1], [0, 0, 1, 1], [], []>} : vector<8x32xbf16>, vector<32x32xbf16>, vector<8x32xf32> -> vector<8x32xf32>
    %7 = arith.addf %3, %6 : vector<8x32xf32>
    %c0_10 = arith.constant 0 : index
    %c0_11 = arith.constant 0 : index
    %8 = vector.load %arg7[%c0_10, %c0_11] : memref<1x32xf32, #tpu.memory_space<vmem>>, vector<1x32xf32>
    %9 = vector.broadcast %8 : vector<1x32xf32> to vector<8x32xf32>
    %10 = arith.addf %7, %9 : vector<8x32xf32>
    %cst_12 = arith.constant 0.000000e+00 : f32
    %11 = vector.broadcast %cst_12 : f32 to vector<8x32xf32>
    %12 = arith.maximumf %10, %11 : vector<8x32xf32>
    %13 = arith.truncf %12 : vector<8x32xf32> to vector<8x32xbf16>
    %c0_13 = arith.constant 0 : index
    %c0_14 = arith.constant 0 : index
    %14 = vector.load %arg8[%c0_13, %c0_14] : memref<32x32xbf16, #tpu.memory_space<vmem>>, vector<32x32xbf16>
    %cst_15 = arith.constant dense<0.000000e+00> : vector<8x32xf32>
    %15 = tpu.matmul %13, %14, %cst_15 {dimension_numbers = #tpu.dot_dimension_numbers<[1], [0], [0], [1], [0, 0, 1, 1], [], []>} : vector<8x32xbf16>, vector<32x32xbf16>, vector<8x32xf32> -> vector<8x32xf32>
    %c0_16 = arith.constant 0 : index
    %c0_17 = arith.constant 0 : index
    %16 = vector.load %arg9[%c0_16, %c0_17] : memref<1x32xf32, #tpu.memory_space<vmem>>, vector<1x32xf32>
    %17 = vector.broadcast %16 : vector<1x32xf32> to vector<8x32xf32>
    %18 = arith.addf %15, %17 : vector<8x32xf32>
    %cst_18 = arith.constant 0.000000e+00 : f32
    %19 = vector.broadcast %cst_18 : f32 to vector<8x32xf32>
    %20 = arith.maximumf %18, %19 : vector<8x32xf32>
    %21 = arith.truncf %20 : vector<8x32xf32> to vector<8x32xbf16>
    %c0_19 = arith.constant 0 : index
    %c0_20 = arith.constant 0 : index
    %22 = vector.load %arg10[%c0_19, %c0_20] : memref<32x32xbf16, #tpu.memory_space<vmem>>, vector<32x32xbf16>
    %cst_21 = arith.constant dense<0.000000e+00> : vector<8x32xf32>
    %23 = tpu.matmul %21, %22, %cst_21 {dimension_numbers = #tpu.dot_dimension_numbers<[1], [0], [0], [1], [0, 0, 1, 1], [], []>} : vector<8x32xbf16>, vector<32x32xbf16>, vector<8x32xf32> -> vector<8x32xf32>
    %c0_22 = arith.constant 0 : index
    %c0_23 = arith.constant 0 : index
    %24 = vector.load %arg11[%c0_22, %c0_23] : memref<1x32xf32, #tpu.memory_space<vmem>>, vector<1x32xf32>
    %25 = vector.broadcast %24 : vector<1x32xf32> to vector<8x32xf32>
    %26 = arith.addf %23, %25 : vector<8x32xf32>
    %cst_24 = arith.constant 0.000000e+00 : f32
    %27 = vector.broadcast %cst_24 : f32 to vector<8x32xf32>
    %28 = arith.maximumf %26, %27 : vector<8x32xf32>
    %29 = arith.truncf %28 : vector<8x32xf32> to vector<8x32xbf16>
    %c0_25 = arith.constant 0 : index
    %c0_26 = arith.constant 0 : index
    %30 = vector.load %arg12[%c0_25, %c0_26] : memref<32x8xbf16, #tpu.memory_space<vmem>>, vector<32x8xbf16>
    %cst_27 = arith.constant dense<0.000000e+00> : vector<8x8xf32>
    %31 = tpu.matmul %29, %30, %cst_27 {dimension_numbers = #tpu.dot_dimension_numbers<[1], [0], [0], [1], [0, 0, 1, 1], [], []>} : vector<8x32xbf16>, vector<32x8xbf16>, vector<8x8xf32> -> vector<8x8xf32>
    %c0_28 = arith.constant 0 : index
    %c0_29 = arith.constant 0 : index
    %32 = vector.load %arg13[%c0_28, %c0_29] : memref<1x8xf32, #tpu.memory_space<vmem>>, vector<1x8xf32>
    %33 = vector.broadcast %32 : vector<1x8xf32> to vector<8x8xf32>
    %34 = arith.addf %31, %33 : vector<8x8xf32>
    %35 = vector.broadcast %0 : vector<8x1xf32> to vector<8x8xf32>
    %36 = arith.mulf %34, %35 : vector<8x8xf32>
    %cst_30 = arith.constant 1.000000e+00 : f32
    %37 = vector.broadcast %cst_30 : f32 to vector<8x1xf32>
    %38 = arith.subf %37, %0 : vector<8x1xf32>
    %cst_31 = arith.constant 1.000000e-10 : f32
    %39 = vector.broadcast %cst_31 : f32 to vector<8x1xf32>
    %40 = arith.mulf %38, %39 : vector<8x1xf32>
    %41 = vector.broadcast %40 : vector<8x1xf32> to vector<8x8xf32>
    %42 = arith.addf %36, %41 : vector<8x8xf32>
    %cst_32 = arith.constant dense<0xFF800000> : vector<8xf32>
    %43 = vector.multi_reduction <maximumf>, %42, %cst_32 [1] : vector<8x8xf32> to vector<8xf32>
    %44 = vector.shape_cast %43 : vector<8xf32> to vector<8x1xf32>
    %45 = vector.broadcast %44 : vector<8x1xf32> to vector<8x8xf32>
    %46 = arith.subf %42, %45 : vector<8x8xf32>
    %47 = math.exp %46 : vector<8x8xf32>
    %cst_33 = arith.constant dense<0.000000e+00> : vector<8xf32>
    %48 = vector.multi_reduction <add>, %47, %cst_33 [1] : vector<8x8xf32> to vector<8xf32>
    %49 = vector.shape_cast %48 : vector<8xf32> to vector<8x1xf32>
    %50 = vector.broadcast %49 : vector<8x1xf32> to vector<8x8xf32>
    %51 = arith.divf %47, %50 : vector<8x8xf32>
    %52 = vector.broadcast %0 : vector<8x1xf32> to vector<8x8xf32>
    %53 = arith.mulf %51, %52 : vector<8x8xf32>
    %c0_34 = arith.constant 0 : index
    %c0_35 = arith.constant 0 : index
    %54 = vector.load %arg4[%c0_34, %c0_35] : memref<8x8xf32, #tpu.memory_space<vmem>>, vector<8x8xf32>
    %cst_36 = arith.constant 9.99999968E-21 : f32
    %55 = vector.broadcast %cst_36 : f32 to vector<8x8xf32>
    %56 = arith.addf %54, %55 : vector<8x8xf32>
    %57 = math.log %56 : vector<8x8xf32>
    %cst_37 = arith.constant 0.000000e+00 : f32
    %58 = vector.broadcast %cst_37 : f32 to vector<8x8xf32>
    %59 = arith.subf %58, %57 : vector<8x8xf32>
    %cst_38 = arith.constant 9.99999968E-21 : f32
    %60 = vector.broadcast %cst_38 : f32 to vector<8x8xf32>
    %61 = arith.addf %59, %60 : vector<8x8xf32>
    %62 = math.log %61 : vector<8x8xf32>
    %cst_39 = arith.constant 0.000000e+00 : f32
    %63 = vector.broadcast %cst_39 : f32 to vector<8x8xf32>
    %64 = arith.subf %63, %62 : vector<8x8xf32>
    %65 = arith.addf %53, %64 : vector<8x8xf32>
    %cst_40 = arith.constant 1.42857146 : f32
    %66 = vector.broadcast %cst_40 : f32 to vector<8x8xf32>
    %67 = arith.mulf %65, %66 : vector<8x8xf32>
    %cst_41 = arith.constant dense<0xFF800000> : vector<8xf32>
    %68 = vector.multi_reduction <maximumf>, %67, %cst_41 [1] : vector<8x8xf32> to vector<8xf32>
    %69 = vector.shape_cast %68 : vector<8xf32> to vector<8x1xf32>
    %70 = vector.broadcast %69 : vector<8x1xf32> to vector<8x8xf32>
    %71 = arith.subf %67, %70 : vector<8x8xf32>
    %72 = math.exp %71 : vector<8x8xf32>
    %cst_42 = arith.constant dense<0.000000e+00> : vector<8xf32>
    %73 = vector.multi_reduction <add>, %72, %cst_42 [1] : vector<8x8xf32> to vector<8xf32>
    %74 = vector.shape_cast %73 : vector<8xf32> to vector<8x1xf32>
    %75 = vector.broadcast %74 : vector<8x1xf32> to vector<8x8xf32>
    %76 = arith.divf %72, %75 : vector<8x8xf32>
    %77 = vector.broadcast %0 : vector<8x1xf32> to vector<8x8xf32>
    %78 = arith.mulf %76, %77 : vector<8x8xf32>
    %c0_43 = arith.constant 0 : index
    %c0_44 = arith.constant 0 : index
    %79 = vector.load %arg15[%c0_43, %c0_44] : memref<8x8xf32, #tpu.memory_space<vmem>>, vector<8x8xf32>
    tpu.vector_store %arg15[%c0_43, %c0_44], %53 {strides = array<i32>} : memref<8x8xf32, #tpu.memory_space<vmem>>, vector<8x8xf32>,
    %c0_45 = arith.constant 0 : index
    %c0_46 = arith.constant 0 : index
    %80 = vector.load %arg16[%c0_45, %c0_46] : memref<8x8xf32, #tpu.memory_space<vmem>>, vector<8x8xf32>
    tpu.vector_store %arg16[%c0_45, %c0_46], %78 {strides = array<i32>} : memref<8x8xf32, #tpu.memory_space<vmem>>, vector<8x8xf32>,
    %c0_47 = arith.constant 0 : index
    %c0_48 = arith.constant 0 : index
    %81 = vector.load %arg14[%c0_47, %c0_48] : memref<8x16xf32, #tpu.memory_space<vmem>>, vector<8x16xf32>
    %cst_49 = arith.constant dense<0.000000e+00> : vector<8x16xf32>
    %82 = tpu.matmul %78, %81, %cst_49 {dimension_numbers = #tpu.dot_dimension_numbers<[1], [0], [0], [1], [0, 0, 1, 1], [], []>} : vector<8x8xf32>, vector<8x16xf32>, vector<8x16xf32> -> vector<8x16xf32>
    %83 = vector.broadcast %0 : vector<8x1xf32> to vector<8x16xf32>
    %84 = arith.mulf %82, %83 : vector<8x16xf32>
    %c0_50 = arith.constant 0 : index
    %c0_51 = arith.constant 0 : index
    %85 = vector.load %arg17[%c0_50, %c0_51] : memref<8x16xf32, #tpu.memory_space<vmem>>, vector<8x16xf32>
    tpu.vector_store %arg17[%c0_50, %c0_51], %84 {strides = array<i32>} : memref<8x16xf32, #tpu.memory_space<vmem>>, vector<8x16xf32>,
    return
  }
  func.func @transform_0(%arg0: i32) -> (i32, i32) {
    %c0_i32 = arith.constant 0 : i32
    %c0_i32_0 = arith.constant 0 : i32
    return %arg0, %c0_i32 : i32, i32
  }
  func.func @transform_1(%arg0: i32) -> (i32, i32) {
    %c0_i32 = arith.constant 0 : i32
    %c0_i32_0 = arith.constant 0 : i32
    return %arg0, %c0_i32 : i32, i32
  }
  func.func @transform_2(%arg0: i32) -> (i32, i32) {
    %c0_i32 = arith.constant 0 : i32
    %c0_i32_0 = arith.constant 0 : i32
    return %arg0, %c0_i32 : i32, i32
  }
  func.func @transform_3(%arg0: i32) -> (i32, i32) {
    %c0_i32 = arith.constant 0 : i32
    %c0_i32_0 = arith.constant 0 : i32
    return %arg0, %c0_i32 : i32, i32
  }
  func.func @transform_4(%arg0: i32) -> (i32, i32) {
    %c0_i32 = arith.constant 0 : i32
    %c0_i32_0 = arith.constant 0 : i32
    %c0_i32_1 = arith.constant 0 : i32
    return %c0_i32, %c0_i32_0 : i32, i32
  }
  func.func @transform_5(%arg0: i32) -> (i32, i32) {
    %c0_i32 = arith.constant 0 : i32
    %c0_i32_0 = arith.constant 0 : i32
    %c0_i32_1 = arith.constant 0 : i32
    return %c0_i32, %c0_i32_0 : i32, i32
  }
  func.func @transform_6(%arg0: i32) -> (i32, i32) {
    %c0_i32 = arith.constant 0 : i32
    %c0_i32_0 = arith.constant 0 : i32
    %c0_i32_1 = arith.constant 0 : i32
    return %c0_i32, %c0_i32_0 : i32, i32
  }
  func.func @transform_7(%arg0: i32) -> (i32, i32) {
    %c0_i32 = arith.constant 0 : i32
    %c0_i32_0 = arith.constant 0 : i32
    %c0_i32_1 = arith.constant 0 : i32
    return %c0_i32, %c0_i32_0 : i32, i32
  }
  func.func @transform_8(%arg0: i32) -> (i32, i32) {
    %c0_i32 = arith.constant 0 : i32
    %c0_i32_0 = arith.constant 0 : i32
    %c0_i32_1 = arith.constant 0 : i32
    return %c0_i32, %c0_i32_0 : i32, i32
  }
  func.func @transform_9(%arg0: i32) -> (i32, i32) {
    %c0_i32 = arith.constant 0 : i32
    %c0_i32_0 = arith.constant 0 : i32
    %c0_i32_1 = arith.constant 0 : i32
    return %c0_i32, %c0_i32_0 : i32, i32
  }
  func.func @transform_10(%arg0: i32) -> (i32, i32) {
    %c0_i32 = arith.constant 0 : i32
    %c0_i32_0 = arith.constant 0 : i32
    %c0_i32_1 = arith.constant 0 : i32
    return %c0_i32, %c0_i32_0 : i32, i32
  }
  func.func @transform_11(%arg0: i32) -> (i32, i32) {
    %c0_i32 = arith.constant 0 : i32
    %c0_i32_0 = arith.constant 0 : i32
    %c0_i32_1 = arith.constant 0 : i32
    return %c0_i32, %c0_i32_0 : i32, i32
  }
  func.func @transform_12(%arg0: i32) -> (i32, i32) {
    %c0_i32 = arith.constant 0 : i32
    %c0_i32_0 = arith.constant 0 : i32
    %c0_i32_1 = arith.constant 0 : i32
    return %c0_i32, %c0_i32_0 : i32, i32
  }
  func.func @transform_13(%arg0: i32) -> (i32, i32) {
    %c0_i32 = arith.constant 0 : i32
    %c0_i32_0 = arith.constant 0 : i32
    %c0_i32_1 = arith.constant 0 : i32
    return %c0_i32, %c0_i32_0 : i32, i32
  }
  func.func @transform_14(%arg0: i32) -> (i32, i32) {
    %c0_i32 = arith.constant 0 : i32
    %c0_i32_0 = arith.constant 0 : i32
    return %arg0, %c0_i32 : i32, i32
  }
  func.func @transform_15(%arg0: i32) -> (i32, i32) {
    %c0_i32 = arith.constant 0 : i32
    %c0_i32_0 = arith.constant 0 : i32
    return %arg0, %c0_i32 : i32, i32
  }
  func.func @transform_16(%arg0: i32) -> (i32, i32) {
    %c0_i32 = arith.constant 0 : i32
    %c0_i32_0 = arith.constant 0 : i32
    return %arg0, %c0_i32 : i32, i32
  }
}

</mosaic_0001>

<llo_original>
// kernel: tpu_custom_call.1
$region0: #{tpu_custom_call.1}
  #allocation0 [shape = 'u32[]', space=smem, size = 0x4, offset = 0x4, fixed_abs, tag = 'smem constant byte address 0x4 - core index']
  #allocation1 [shape = 'u32[144,128]{1,0:T(1,128)}', space=vmem, size = 0x12000, scoped, tag = 'internal scratch']
  %s0 = inlined_call_operand.vmem [shape: bf16[24,16], index: 0, kind: input, shape index: {}]
  %s1 = inlined_call_operand.vmem [shape: bf16[24,32], index: 1, kind: input, shape index: {}]
  %s2 = inlined_call_operand.vmem [shape: f32[24,1], index: 2, kind: input, shape index: {}]
  %s3 = inlined_call_operand.vmem [shape: f32[24,8], index: 3, kind: input, shape index: {}]
  %s4 = inlined_call_operand.vmem [shape: bf16[16,32], index: 4, kind: input, shape index: {}]
  %s5 = inlined_call_operand.vmem [shape: bf16[32,32], index: 5, kind: input, shape index: {}]
  %s6 = inlined_call_operand.vmem [shape: f32[1,32], index: 6, kind: input, shape index: {}]
  %s7 = inlined_call_operand.vmem [shape: bf16[32,32], index: 7, kind: input, shape index: {}]
  %s8 = inlined_call_operand.vmem [shape: f32[1,32], index: 8, kind: input, shape index: {}]
  %s9 = inlined_call_operand.vmem [shape: bf16[32,32], index: 9, kind: input, shape index: {}]
  %s10 = inlined_call_operand.vmem [shape: f32[1,32], index: 10, kind: input, shape index: {}]
  %s11 = inlined_call_operand.vmem [shape: bf16[32,8], index: 11, kind: input, shape index: {}]
  %s12 = inlined_call_operand.vmem [shape: f32[1,8], index: 12, kind: input, shape index: {}]
  %s13 = inlined_call_operand.vmem [shape: f32[8,16], index: 13, kind: input, shape index: {}]
  %s14 = inlined_call_operand.vmem [shape: f32[24,8], index: 14, kind: output, shape index: {0}]
  %s15 = inlined_call_operand.vmem [shape: f32[24,8], index: 15, kind: output, shape index: {1}]
  %s16 = inlined_call_operand.vmem [shape: f32[24,16], index: 16, kind: output, shape index: {2}]
  %17 = xla_tuple %s14, %s15, %s16
  %s18 = sld [smem:[#allocation0]]
  $region105: #{tpu_custom_call.1} parent=0
    _
  %s20 = ssub.s32 1, %s18
  %s21 = scalar_select 0, %s20, %s18
  loop: start=0, step=1, limit=5
  $region2: #{tpu_custom_call.1} parent=0 // loop_pre_header
    _
  $region3: #{tpu_custom_call.1} parent=0 // loop_header
    %s23 = sphi 0, %s27
    %p24 = scmp.ge.s32.totalorder %s23, 5
    %s33 = sphi 0, %s35
    %s36 = sphi 0, %s33
    %s37 = sphi 0, %s36
    %s53 = sphi 0, %s37
    %s59 = sphi 0, %s61
    %s62 = sphi 0, %s59
    %s63 = sphi 0, %s62
    %s79 = sphi 0, %s63
    %s85 = sphi 0, %s87
    %s88 = sphi 0, %s85
    %s89 = sphi 0, %s88
    %s105 = sphi 0, %s89
    %s111 = sphi 0, %s113
    %s114 = sphi 0, %s111
    %s115 = sphi 0, %s114
    %s131 = sphi 0, %s115
    %s135 = sphi 0, %s135
    %s137 = sphi 0, %s135
    %s138 = sphi 0, %s137
    %s152 = sphi 0, %s138
    %s156 = sphi 0, %s156
    %s158 = sphi 0, %s156
    %s159 = sphi 0, %s158
    %s173 = sphi 0, %s159
    %s177 = sphi 0, %s177
    %s179 = sphi 0, %s177
    %s180 = sphi 0, %s179
    %s194 = sphi 0, %s180
    %s198 = sphi 0, %s198
    %s200 = sphi 0, %s198
    %s201 = sphi 0, %s200
    %s215 = sphi 0, %s201
    %s219 = sphi 0, %s219
    %s221 = sphi 0, %s219
    %s222 = sphi 0, %s221
    %s236 = sphi 0, %s222
    %s240 = sphi 0, %s240
    %s242 = sphi 0, %s240
    %s243 = sphi 0, %s242
    %s257 = sphi 0, %s243
    %s261 = sphi 0, %s261
    %s263 = sphi 0, %s261
    %s264 = sphi 0, %s263
    %s278 = sphi 0, %s264
    %s282 = sphi 0, %s282
    %s284 = sphi 0, %s282
    %s285 = sphi 0, %s284
    %s299 = sphi 0, %s285
    %s303 = sphi 0, %s303
    %s305 = sphi 0, %s303
    %s306 = sphi 0, %s305
    %s320 = sphi 0, %s306
    %s324 = sphi 0, %s324
    %s326 = sphi 0, %s324
    %s327 = sphi 0, %s326
    %s341 = sphi 0, %s327
    %s347 = sphi 0, %s349
    %s350 = sphi 0, %s347
    %s351 = sphi 0, %s350
    %s367 = sphi 0, %s351
    %s373 = sphi 0, %s375
    %s376 = sphi 0, %s373
    %s377 = sphi 0, %s376
    %s393 = sphi 0, %s377
    %s399 = sphi 0, %s401
    %s402 = sphi 0, %s399
    %s403 = sphi 0, %s402
    %s419 = sphi 0, %s403
  $region4: #{tpu_custom_call.1} parent=0 // loop_header_branch
    %26 = sbr.rel (%p24) target = $region8
  $region5: #{tpu_custom_call.1} parent=0 // loop_body
    %s28 = ssub.s32 %s23, 1
    %s29 = ssub.s32 %s23, 2
    %s30 = sadd.s32 %s23, 1
    %s31 = ssub.s32 %s23, %s30
    %p32 = scmp.eq.s32.totalorder %s31, 0
    %s34 = sadd.s32 %s33, 1
    %s35 = scalar_select %p32, %s33, %s34
    %p38 = pneg %p32
    %p39 = scmp.eq.s32.totalorder %s23, 2
    %p40 = por %p38, %p39
    %p41 = scmp.ne.s32.totalorder %s33, %s36
    %p42 = scmp.eq.s32.totalorder %s23, 0
    %p43 = por %p41, %p42
    %p44 = scmp.ne.s32.totalorder %s33, %s36
    %p45 = scmp.eq.s32.totalorder %s28, 2
    %p46 = por %p44, %p45
    %p47 = scmp.ne.s32.totalorder %s36, %s37
    %p48 = scmp.eq.s32.totalorder %s28, 0
    %p49 = por %p47, %p48
    %p50 = scmp.ne.s32.totalorder %s36, %s37
    %p51 = scmp.eq.s32.totalorder %s29, 2
    %p52 = por %p50, %p51
    %p54 = scmp.ne.s32.totalorder %s37, %s53
    %p55 = scmp.eq.s32.totalorder %s29, 0
    %p56 = por %p54, %p55
    %s57 = ssub.s32 %s23, %s30
    %p58 = scmp.eq.s32.totalorder %s57, 0
    %s60 = sadd.s32 %s59, 1
    %s61 = scalar_select %p58, %s59, %s60
    %p64 = pneg %p58
    %p65 = scmp.eq.s32.totalorder %s23, 2
    %p66 = por %p64, %p65
    %p67 = scmp.ne.s32.totalorder %s59, %s62
    %p68 = scmp.eq.s32.totalorder %s23, 0
    %p69 = por %p67, %p68
    %p70 = scmp.ne.s32.totalorder %s59, %s62
    %p71 = scmp.eq.s32.totalorder %s28, 2
    %p72 = por %p70, %p71
    %p73 = scmp.ne.s32.totalorder %s62, %s63
    %p74 = scmp.eq.s32.totalorder %s28, 0
    %p75 = por %p73, %p74
    %p76 = scmp.ne.s32.totalorder %s62, %s63
    %p77 = scmp.eq.s32.totalorder %s29, 2
    %p78 = por %p76, %p77
    %p80 = scmp.ne.s32.totalorder %s63, %s79
    %p81 = scmp.eq.s32.totalorder %s29, 0
    %p82 = por %p80, %p81
    %s83 = ssub.s32 %s23, %s30
    %p84 = scmp.eq.s32.totalorder %s83, 0
    %s86 = sadd.s32 %s85, 1
    %s87 = scalar_select %p84, %s85, %s86
    %p90 = pneg %p84
    %p91 = scmp.eq.s32.totalorder %s23, 2
    %p92 = por %p90, %p91
    %p93 = scmp.ne.s32.totalorder %s85, %s88
    %p94 = scmp.eq.s32.totalorder %s23, 0
    %p95 = por %p93, %p94
    %p96 = scmp.ne.s32.totalorder %s85, %s88
    %p97 = scmp.eq.s32.totalorder %s28, 2
    %p98 = por %p96, %p97
    %p99 = scmp.ne.s32.totalorder %s88, %s89
    %p100 = scmp.eq.s32.totalorder %s28, 0
    %p101 = por %p99, %p100
    %p102 = scmp.ne.s32.totalorder %s88, %s89
    %p103 = scmp.eq.s32.totalorder %s29, 2
    %p104 = por %p102, %p103
    %p106 = scmp.ne.s32.totalorder %s89, %s105
    %p107 = scmp.eq.s32.totalorder %s29, 0
    %p108 = por %p106, %p107
    %s109 = ssub.s32 %s23, %s30
    %p110 = scmp.eq.s32.totalorder %s109, 0
    %s112 = sadd.s32 %s111, 1
    %s113 = scalar_select %p110, %s111, %s112
    %p116 = pneg %p110
    %p117 = scmp.eq.s32.totalorder %s23, 2
    %p118 = por %p116, %p117
    %p119 = scmp.ne.s32.totalorder %s111, %s114
    %p120 = scmp.eq.s32.totalorder %s23, 0
    %p121 = por %p119, %p120
    %p122 = scmp.ne.s32.totalorder %s111, %s114
    %p123 = scmp.eq.s32.totalorder %s28, 2
    %p124 = por %p122, %p123
    %p125 = scmp.ne.s32.totalorder %s114, %s115
    %p126 = scmp.eq.s32.totalorder %s28, 0
    %p127 = por %p125, %p126
    %p128 = scmp.ne.s32.totalorder %s114, %s115
    %p129 = scmp.eq.s32.totalorder %s29, 2
    %p130 = por %p128, %p129
    %p132 = scmp.ne.s32.totalorder %s115, %s131
    %p133 = scmp.eq.s32.totalorder %s29, 0
    %p134 = por %p132, %p133
    %s136 = sadd.s32 %s135, 1
    %p139 = scmp.eq.s32.totalorder %s23, 2
    %p140 = scmp.ne.s32.totalorder %s135, %s137
    %p141 = scmp.eq.s32.totalorder %s23, 0
    %p142 = por %p140, %p141
    %p143 = scmp.ne.s32.totalorder %s135, %s137
    %p144 = scmp.eq.s32.totalorder %s28, 2
    %p145 = por %p143, %p144
    %p146 = scmp.ne.s32.totalorder %s137, %s138
    %p147 = scmp.eq.s32.totalorder %s28, 0
    %p148 = por %p146, %p147
    %p149 = scmp.ne.s32.totalorder %s137, %s138
    %p150 = scmp.eq.s32.totalorder %s29, 2
    %p151 = por %p149, %p150
    %p153 = scmp.ne.s32.totalorder %s138, %s152
    %p154 = scmp.eq.s32.totalorder %s29, 0
    %p155 = por %p153, %p154
    %s157 = sadd.s32 %s156, 1
    %p160 = scmp.eq.s32.totalorder %s23, 2
    %p161 = scmp.ne.s32.totalorder %s156, %s158
    %p162 = scmp.eq.s32.totalorder %s23, 0
    %p163 = por %p161, %p162
    %p164 = scmp.ne.s32.totalorder %s156, %s158
    %p165 = scmp.eq.s32.totalorder %s28, 2
    %p166 = por %p164, %p165
    %p167 = scmp.ne.s32.totalorder %s158, %s159
    %p168 = scmp.eq.s32.totalorder %s28, 0
    %p169 = por %p167, %p168
    %p170 = scmp.ne.s32.totalorder %s158, %s159
    %p171 = scmp.eq.s32.totalorder %s29, 2
    %p172 = por %p170, %p171
    %p174 = scmp.ne.s32.totalorder %s159, %s173
    %p175 = scmp.eq.s32.totalorder %s29, 0
    %p176 = por %p174, %p175
    %s178 = sadd.s32 %s177, 1
    %p181 = scmp.eq.s32.totalorder %s23, 2
    %p182 = scmp.ne.s32.totalorder %s177, %s179
    %p183 = scmp.eq.s32.totalorder %s23, 0
    %p184 = por %p182, %p183
    %p185 = scmp.ne.s32.totalorder %s177, %s179
    %p186 = scmp.eq.s32.totalorder %s28, 2
    %p187 = por %p185, %p186
    %p188 = scmp.ne.s32.totalorder %s179, %s180
    %p189 = scmp.eq.s32.totalorder %s28, 0
    %p190 = por %p188, %p189
    %p191 = scmp.ne.s32.totalorder %s179, %s180
    %p192 = scmp.eq.s32.totalorder %s29, 2
    %p193 = por %p191, %p192
    %p195 = scmp.ne.s32.totalorder %s180, %s194
    %p196 = scmp.eq.s32.totalorder %s29, 0
    %p197 = por %p195, %p196
    %s199 = sadd.s32 %s198, 1
    %p202 = scmp.eq.s32.totalorder %s23, 2
    %p203 = scmp.ne.s32.totalorder %s198, %s200
    %p204 = scmp.eq.s32.totalorder %s23, 0
    %p205 = por %p203, %p204
    %p206 = scmp.ne.s32.totalorder %s198, %s200
    %p207 = scmp.eq.s32.totalorder %s28, 2
    %p208 = por %p206, %p207
    %p209 = scmp.ne.s32.totalorder %s200, %s201
    %p210 = scmp.eq.s32.totalorder %s28, 0
    %p211 = por %p209, %p210
    %p212 = scmp.ne.s32.totalorder %s200, %s201
    %p213 = scmp.eq.s32.totalorder %s29, 2
    %p214 = por %p212, %p213
    %p216 = scmp.ne.s32.totalorder %s201, %s215
    %p217 = scmp.eq.s32.totalorder %s29, 0
    %p218 = por %p216, %p217
    %s220 = sadd.s32 %s219, 1
    %p223 = scmp.eq.s32.totalorder %s23, 2
    %p224 = scmp.ne.s32.totalorder %s219, %s221
    %p225 = scmp.eq.s32.totalorder %s23, 0
    %p226 = por %p224, %p225
    %p227 = scmp.ne.s32.totalorder %s219, %s221
    %p228 = scmp.eq.s32.totalorder %s28, 2
    %p229 = por %p227, %p228
    %p230 = scmp.ne.s32.totalorder %s221, %s222
    %p231 = scmp.eq.s32.totalorder %s28, 0
    %p232 = por %p230, %p231
    %p233 = scmp.ne.s32.totalorder %s221, %s222
    %p234 = scmp.eq.s32.totalorder %s29, 2
    %p235 = por %p233, %p234
    %p237 = scmp.ne.s32.totalorder %s222, %s236
    %p238 = scmp.eq.s32.totalorder %s29, 0
    %p239 = por %p237, %p238
    %s241 = sadd.s32 %s240, 1
    %p244 = scmp.eq.s32.totalorder %s23, 2
    %p245 = scmp.ne.s32.totalorder %s240, %s242
    %p246 = scmp.eq.s32.totalorder %s23, 0
    %p247 = por %p245, %p246
    %p248 = scmp.ne.s32.totalorder %s240, %s242
    %p249 = scmp.eq.s32.totalorder %s28, 2
    %p250 = por %p248, %p249
    %p251 = scmp.ne.s32.totalorder %s242, %s243
    %p252 = scmp.eq.s32.totalorder %s28, 0
    %p253 = por %p251, %p252
    %p254 = scmp.ne.s32.totalorder %s242, %s243
    %p255 = scmp.eq.s32.totalorder %s29, 2
    %p256 = por %p254, %p255
    %p258 = scmp.ne.s32.totalorder %s243, %s257
    %p259 = scmp.eq.s32.totalorder %s29, 0
    %p260 = por %p258, %p259
    %s262 = sadd.s32 %s261, 1
    %p265 = scmp.eq.s32.totalorder %s23, 2
    %p266 = scmp.ne.s32.totalorder %s261, %s263
    %p267 = scmp.eq.s32.totalorder %s23, 0
    %p268 = por %p266, %p267
    %p269 = scmp.ne.s32.totalorder %s261, %s263
    %p270 = scmp.eq.s32.totalorder %s28, 2
    %p271 = por %p269, %p270
    %p272 = scmp.ne.s32.totalorder %s263, %s264
    %p273 = scmp.eq.s32.totalorder %s28, 0
    %p274 = por %p272, %p273
    %p275 = scmp.ne.s32.totalorder %s263, %s264
    %p276 = scmp.eq.s32.totalorder %s29, 2
    %p277 = por %p275, %p276
    %p279 = scmp.ne.s32.totalorder %s264, %s278
    %p280 = scmp.eq.s32.totalorder %s29, 0
    %p281 = por %p279, %p280
    %s283 = sadd.s32 %s282, 1
    %p286 = scmp.eq.s32.totalorder %s23, 2
    %p287 = scmp.ne.s32.totalorder %s282, %s284
    %p288 = scmp.eq.s32.totalorder %s23, 0
    %p289 = por %p287, %p288
    %p290 = scmp.ne.s32.totalorder %s282, %s284
    %p291 = scmp.eq.s32.totalorder %s28, 2
    %p292 = por %p290, %p291
    %p293 = scmp.ne.s32.totalorder %s284, %s285
    %p294 = scmp.eq.s32.totalorder %s28, 0
    %p295 = por %p293, %p294
    %p296 = scmp.ne.s32.totalorder %s284, %s285
    %p297 = scmp.eq.s32.totalorder %s29, 2
    %p298 = por %p296, %p297
    %p300 = scmp.ne.s32.totalorder %s285, %s299
    %p301 = scmp.eq.s32.totalorder %s29, 0
    %p302 = por %p300, %p301
    %s304 = sadd.s32 %s303, 1
    %p307 = scmp.eq.s32.totalorder %s23, 2
    %p308 = scmp.ne.s32.totalorder %s303, %s305
    %p309 = scmp.eq.s32.totalorder %s23, 0
    %p310 = por %p308, %p309
    %p311 = scmp.ne.s32.totalorder %s303, %s305
    %p312 = scmp.eq.s32.totalorder %s28, 2
    %p313 = por %p311, %p312
    %p314 = scmp.ne.s32.totalorder %s305, %s306
    %p315 = scmp.eq.s32.totalorder %s28, 0
    %p316 = por %p314, %p315
    %p317 = scmp.ne.s32.totalorder %s305, %s306
    %p318 = scmp.eq.s32.totalorder %s29, 2
    %p319 = por %p317, %p318
    %p321 = scmp.ne.s32.totalorder %s306, %s320
    %p322 = scmp.eq.s32.totalorder %s29, 0
    %p323 = por %p321, %p322
    %s325 = sadd.s32 %s324, 1
    %p328 = scmp.eq.s32.totalorder %s23, 2
    %p329 = scmp.ne.s32.totalorder %s324, %s326
    %p330 = scmp.eq.s32.totalorder %s23, 0
    %p331 = por %p329, %p330
    %p332 = scmp.ne.s32.totalorder %s324, %s326
    %p333 = scmp.eq.s32.totalorder %s28, 2
    %p334 = por %p332, %p333
    %p335 = scmp.ne.s32.totalorder %s326, %s327
    %p336 = scmp.eq.s32.totalorder %s28, 0
    %p337 = por %p335, %p336
    %p338 = scmp.ne.s32.totalorder %s326, %s327
    %p339 = scmp.eq.s32.totalorder %s29, 2
    %p340 = por %p338, %p339
    %p342 = scmp.ne.s32.totalorder %s327, %s341
    %p343 = scmp.eq.s32.totalorder %s29, 0
    %p344 = por %p342, %p343
    %s345 = ssub.s32 %s23, %s30
    %p346 = scmp.eq.s32.totalorder %s345, 0
    %s348 = sadd.s32 %s347, 1
    %s349 = scalar_select %p346, %s347, %s348
    %p352 = pneg %p346
    %p353 = scmp.eq.s32.totalorder %s23, 2
    %p354 = por %p352, %p353
    %p355 = scmp.ne.s32.totalorder %s347, %s350
    %p356 = scmp.eq.s32.totalorder %s23, 0
    %p357 = por %p355, %p356
    %p358 = scmp.ne.s32.totalorder %s347, %s350
    %p359 = scmp.eq.s32.totalorder %s28, 2
    %p360 = por %p358, %p359
    %p361 = scmp.ne.s32.totalorder %s350, %s351
    %p362 = scmp.eq.s32.totalorder %s28, 0
    %p363 = por %p361, %p362
    %p364 = scmp.ne.s32.totalorder %s350, %s351
    %p365 = scmp.eq.s32.totalorder %s29, 2
    %p366 = por %p364, %p365
    %p368 = scmp.ne.s32.totalorder %s351, %s367
    %p369 = scmp.eq.s32.totalorder %s29, 0
    %p370 = por %p368, %p369
    %s371 = ssub.s32 %s23, %s30
    %p372 = scmp.eq.s32.totalorder %s371, 0
    %s374 = sadd.s32 %s373, 1
    %s375 = scalar_select %p372, %s373, %s374
    %p378 = pneg %p372
    %p379 = scmp.eq.s32.totalorder %s23, 2
    %p380 = por %p378, %p379
    %p381 = scmp.ne.s32.totalorder %s373, %s376
    %p382 = scmp.eq.s32.totalorder %s23, 0
    %p383 = por %p381, %p382
    %p384 = scmp.ne.s32.totalorder %s373, %s376
    %p385 = scmp.eq.s32.totalorder %s28, 2
    %p386 = por %p384, %p385
    %p387 = scmp.ne.s32.totalorder %s376, %s377
    %p388 = scmp.eq.s32.totalorder %s28, 0
    %p389 = por %p387, %p388
    %p390 = scmp.ne.s32.totalorder %s376, %s377
    %p391 = scmp.eq.s32.totalorder %s29, 2
    %p392 = por %p390, %p391
    %p394 = scmp.ne.s32.totalorder %s377, %s393
    %p395 = scmp.eq.s32.totalorder %s29, 0
    %p396 = por %p394, %p395
    %s397 = ssub.s32 %s23, %s30
    %p398 = scmp.eq.s32.totalorder %s397, 0
    %s400 = sadd.s32 %s399, 1
    %s401 = scalar_select %p398, %s399, %s400
    %p404 = pneg %p398
    %p405 = scmp.eq.s32.totalorder %s23, 2
    %p406 = por %p404, %p405
    %p407 = scmp.ne.s32.totalorder %s399, %s402
    %p408 = scmp.eq.s32.totalorder %s23, 0
    %p409 = por %p407, %p408
    %p410 = scmp.ne.s32.totalorder %s399, %s402
    %p411 = scmp.eq.s32.totalorder %s28, 2
    %p412 = por %p410, %p411
    %p413 = scmp.ne.s32.totalorder %s402, %s403
    %p414 = scmp.eq.s32.totalorder %s28, 0
    %p415 = por %p413, %p414
    %p416 = scmp.ne.s32.totalorder %s402, %s403
    %p417 = scmp.eq.s32.totalorder %s29, 2
    %p418 = por %p416, %p417
    %p420 = scmp.ne.s32.totalorder %s403, %s419
    %p421 = scmp.eq.s32.totalorder %s29, 0
    %p422 = por %p420, %p421
    %p423 = scmp.le.s32.totalorder 1, %s23
    %p424 = scmp.lt.s32.totalorder %s23, 4
    %p425 = pnand %p423, %p424
    %p426 = pneg %p425
    // Predicated region
    $region9: #{tpu_custom_call.1} parent=5 // pred_check
      _
    $region10: #{tpu_custom_call.1} parent=5 // pred_check_branch
      %428 = sbr.rel (%p425) target = $region12
    $region11: #{tpu_custom_call.1} parent=5 // pred_region
      %s429 = ssub.s32 %s23, 1
      // Predicated region
      $region13: #{tpu_custom_call.1} parent=11 // pred_check
        %p430 = pneg %p148
      $region14: #{tpu_custom_call.1} parent=11 // pred_check_branch
        %432 = sbr.rel (%p430) target = $region16
      $region15: #{tpu_custom_call.1} parent=11 // pred_region
        _
      $region16: #{tpu_custom_call.1} parent=11 // pred_fallthru
        _
      // Predicated region
      $region17: #{tpu_custom_call.1} parent=11 // pred_check
        %p433 = pneg %p169
      $region18: #{tpu_custom_call.1} parent=11 // pred_check_branch
        %435 = sbr.rel (%p433) target = $region20
      $region19: #{tpu_custom_call.1} parent=11 // pred_region
        _
      $region20: #{tpu_custom_call.1} parent=11 // pred_fallthru
        _
      // Predicated region
      $region21: #{tpu_custom_call.1} parent=11 // pred_check
        %p436 = pneg %p190
      $region22: #{tpu_custom_call.1} parent=11 // pred_check_branch
        %438 = sbr.rel (%p436) target = $region24
      $region23: #{tpu_custom_call.1} parent=11 // pred_region
        _
      $region24: #{tpu_custom_call.1} parent=11 // pred_fallthru
        _
      // Predicated region
      $region25: #{tpu_custom_call.1} parent=11 // pred_check
        %p439 = pneg %p211
      $region26: #{tpu_custom_call.1} parent=11 // pred_check_branch
        %441 = sbr.rel (%p439) target = $region28
      $region27: #{tpu_custom_call.1} parent=11 // pred_region
        _
      $region28: #{tpu_custom_call.1} parent=11 // pred_fallthru
        _
      // Predicated region
      $region29: #{tpu_custom_call.1} parent=11 // pred_check
        %p442 = pneg %p232
      $region30: #{tpu_custom_call.1} parent=11 // pred_check_branch
        %444 = sbr.rel (%p442) target = $region32
      $region31: #{tpu_custom_call.1} parent=11 // pred_region
        _
      $region32: #{tpu_custom_call.1} parent=11 // pred_fallthru
        _
      // Predicated region
      $region33: #{tpu_custom_call.1} parent=11 // pred_check
        %p445 = pneg %p253
      $region34: #{tpu_custom_call.1} parent=11 // pred_check_branch
        %447 = sbr.rel (%p445) target = $region36
      $region35: #{tpu_custom_call.1} parent=11 // pred_region
        _
      $region36: #{tpu_custom_call.1} parent=11 // pred_fallthru
        _
      // Predicated region
      $region37: #{tpu_custom_call.1} parent=11 // pred_check
        %p448 = pneg %p274
      $region38: #{tpu_custom_call.1} parent=11 // pred_check_branch
        %450 = sbr.rel (%p448) target = $region40
      $region39: #{tpu_custom_call.1} parent=11 // pred_region
        _
      $region40: #{tpu_custom_call.1} parent=11 // pred_fallthru
        _
      // Predicated region
      $region41: #{tpu_custom_call.1} parent=11 // pred_check
        %p451 = pneg %p295
      $region42: #{tpu_custom_call.1} parent=11 // pred_check_branch
        %453 = sbr.rel (%p451) target = $region44
      $region43: #{tpu_custom_call.1} parent=11 // pred_region
        _
      $region44: #{tpu_custom_call.1} parent=11 // pred_fallthru
        _
      // Predicated region
      $region45: #{tpu_custom_call.1} parent=11 // pred_check
        %p454 = pneg %p316
      $region46: #{tpu_custom_call.1} parent=11 // pred_check_branch
        %456 = sbr.rel (%p454) target = $region48
      $region47: #{tpu_custom_call.1} parent=11 // pred_region
        _
      $region48: #{tpu_custom_call.1} parent=11 // pred_fallthru
        _
      // Predicated region
      $region49: #{tpu_custom_call.1} parent=11 // pred_check
        %p457 = pneg %p337
      $region50: #{tpu_custom_call.1} parent=11 // pred_check_branch
        %459 = sbr.rel (%p457) target = $region52
      $region51: #{tpu_custom_call.1} parent=11 // pred_region
        _
      $region52: #{tpu_custom_call.1} parent=11 // pred_fallthru
        _
    $region12: #{tpu_custom_call.1} parent=5 // pred_fallthru
      _
    %p460 = scmp.lt.s32.totalorder %s23, 3
    // Predicated region
    $region53: #{tpu_custom_call.1} parent=5 // pred_check
      %p461 = pneg %p460
    $region54: #{tpu_custom_call.1} parent=5 // pred_check_branch
      %463 = sbr.rel (%p461) target = $region56
    $region55: #{tpu_custom_call.1} parent=5 // pred_region
      // Predicated region
      $region57: #{tpu_custom_call.1} parent=55 // pred_check
        %p464 = pneg %p43
      $region58: #{tpu_custom_call.1} parent=55 // pred_check_branch
        %466 = sbr.rel (%p464) target = $region60
      $region59: #{tpu_custom_call.1} parent=55 // pred_region
        %p467 = scmp.lt.s32.totalorder %s23, 2
        %s468 = scalar_select %p467, %s23, 2
        %s469 = smul.addr %s468, 4
        %s470 = scalar_lea.vmem %s0, %s469
      $region60: #{tpu_custom_call.1} parent=55 // pred_fallthru
        _
      // Predicated region
      $region61: #{tpu_custom_call.1} parent=55 // pred_check
        %p471 = pneg %p69
      $region62: #{tpu_custom_call.1} parent=55 // pred_check_branch
        %473 = sbr.rel (%p471) target = $region64
      $region63: #{tpu_custom_call.1} parent=55 // pred_region
        %p474 = scmp.lt.s32.totalorder %s23, 2
        %s475 = scalar_select %p474, %s23, 2
        %s476 = smul.addr %s475, 4
        %s477 = scalar_lea.vmem %s1, %s476
      $region64: #{tpu_custom_call.1} parent=55 // pred_fallthru
        _
      // Predicated region
      $region65: #{tpu_custom_call.1} parent=55 // pred_check
        %p478 = pneg %p95
      $region66: #{tpu_custom_call.1} parent=55 // pred_check_branch
        %480 = sbr.rel (%p478) target = $region68
      $region67: #{tpu_custom_call.1} parent=55 // pred_region
        %p481 = scmp.lt.s32.totalorder %s23, 2
        %s482 = scalar_select %p481, %s23, 2
        %s483 = smul.addr %s482, 8
        %s484 = scalar_lea.vmem %s2, %s483
      $region68: #{tpu_custom_call.1} parent=55 // pred_fallthru
        _
      // Predicated region
      $region69: #{tpu_custom_call.1} parent=55 // pred_check
        %p485 = pneg %p121
      $region70: #{tpu_custom_call.1} parent=55 // pred_check_branch
        %487 = sbr.rel (%p485) target = $region72
      $region71: #{tpu_custom_call.1} parent=55 // pred_region
        %p488 = scmp.lt.s32.totalorder %s23, 2
        %s489 = scalar_select %p488, %s23, 2
        %s490 = smul.addr %s489, 8
        %s491 = scalar_lea.vmem %s3, %s490
      $region72: #{tpu_custom_call.1} parent=55 // pred_fallthru
        _
    $region56: #{tpu_custom_call.1} parent=5 // pred_fallthru
      _
    %p492 = scmp.le.s32.totalorder 1, %s23
    %p493 = scmp.lt.s32.totalorder %s23, 4
    %p494 = pnand %p492, %p493
    %p495 = pneg %p494
    // Predicated region
    $region73: #{tpu_custom_call.1} parent=5 // pred_check
      _
    $region74: #{tpu_custom_call.1} parent=5 // pred_check_branch
      %497 = sbr.rel (%p494) target = $region76
    $region75: #{tpu_custom_call.1} parent=5 // pred_region
      %s498 = ssub.s32 %s23, 1
      %p499 = scmp.lt.s32.totalorder %s28, 2
      %s500 = scalar_select %p499, %s28, 2
      %s501 = smul.addr %s500, 4
      %s502 = scalar_lea.vmem %s0, %s501
      %p503 = pneg %p49
      %p504 = pneg %p46
      %p505 = scmp.lt.s32.totalorder %s28, 2
      %s506 = scalar_select %p505, %s28, 2
      %s507 = smul.addr %s506, 4
      %s508 = scalar_lea.vmem %s1, %s507
      %p509 = pneg %p75
      %p510 = pneg %p72
      %p511 = scmp.lt.s32.totalorder %s28, 2
      %s512 = scalar_select %p511, %s28, 2
      %s513 = smul.addr %s512, 8
      %s514 = scalar_lea.vmem %s2, %s513
      %p515 = pneg %p101
      %p516 = pneg %p98
      %p517 = scmp.lt.s32.totalorder %s28, 2
      %s518 = scalar_select %p517, %s28, 2
      %s519 = smul.addr %s518, 8
      %s520 = scalar_lea.vmem %s3, %s519
      %p521 = pneg %p127
      %p522 = pneg %p124
      %p523 = pneg %p148
      %p524 = pneg %p145
      %p525 = pneg %p169
      %p526 = pneg %p166
      %p527 = pneg %p190
      %p528 = pneg %p187
      %p529 = pneg %p211
      %p530 = pneg %p208
      %p531 = pneg %p232
      %p532 = pneg %p229
      %p533 = pneg %p253
      %p534 = pneg %p250
      %p535 = pneg %p274
      %p536 = pneg %p271
      %p537 = pneg %p295
      %p538 = pneg %p292
      %p539 = pneg %p316
      %p540 = pneg %p313
      %p541 = pneg %p337
      %p542 = pneg %p334
      %p543 = pneg %p363
      %p544 = pneg %p360
      %p545 = scmp.lt.s32.totalorder %s28, 2
      %s546 = scalar_select %p545, %s28, 2
      %s547 = smul.addr %s546, 8
      %s548 = scalar_lea.vmem %s14, %s547
      %p549 = pneg %p389
      %p550 = pneg %p386
      %p551 = scmp.lt.s32.totalorder %s28, 2
      %s552 = scalar_select %p551, %s28, 2
      %s553 = smul.addr %s552, 8
      %s554 = scalar_lea.vmem %s15, %s553
      %p555 = pneg %p415
      %p556 = pneg %p412
      %p557 = scmp.lt.s32.totalorder %s28, 2
      %s558 = scalar_select %p557, %s28, 2
      %s559 = smul.addr %s558, 8
      %s560 = scalar_lea.vmem %s16, %s559
      %p561 = scmp.lt.s32.totalorder %s28, 2
      %s562 = scalar_select %p561, %s28, 2
      %s563 = smul.addr %s562, 4
      %s564 = scalar_lea.vmem %s0, %s563
      %p565 = scmp.lt.s32.totalorder %s28, 2
      %s566 = scalar_select %p565, %s28, 2
      %s567 = smul.addr %s566, 4
      %s568 = scalar_lea.vmem %s1, %s567
      %p569 = scmp.lt.s32.totalorder %s28, 2
      %s570 = scalar_select %p569, %s28, 2
      %s571 = smul.addr %s570, 8
      %s572 = scalar_lea.vmem %s2, %s571
      %p573 = scmp.lt.s32.totalorder %s28, 2
      %s574 = scalar_select %p573, %s28, 2
      %s575 = smul.addr %s574, 8
      %s576 = scalar_lea.vmem %s3, %s575
      %p577 = scmp.lt.s32.totalorder %s28, 2
      %s578 = scalar_select %p577, %s28, 2
      %s579 = smul.addr %s578, 8
      %s580 = scalar_lea.vmem %s14, %s579
      %p581 = scmp.lt.s32.totalorder %s28, 2
      %s582 = scalar_select %p581, %s28, 2
      %s583 = smul.addr %s582, 8
      %s584 = scalar_lea.vmem %s15, %s583
      %p585 = scmp.lt.s32.totalorder %s28, 2
      %s586 = scalar_select %p585, %s28, 2
      %s587 = smul.addr %s586, 8
      %s588 = scalar_lea.vmem %s16, %s587
      %v590 = vld [vmem:[%s572] sm:$0xff]
      %v591 = vld [vmem:[%s564] sm:$0xf]
      %v592 = vld [vmem:[%s4] sm:$0xf]
      %v593 = vld [vmem:[%s4 + $0x4] sm:$0xf]
      %v594 = vld [vmem:[%s568] sm:$0xf]
      %v595 = vld [vmem:[%s5] sm:$0xf]
      %v596 = vld [vmem:[%s5 + $0x4] sm:$0xf]
      %v597 = vld [vmem:[%s5 + $0x8] sm:$0xf]
      %v598 = vld [vmem:[%s5 + $0xc] sm:$0xf]
      %v603 = vunpack.c.l.b16 %v595
      %v604 = vunpack.c.l.b16 %v596
      %v605 = vunpack.c.l.b16 %v597
      %v606 = vunpack.c.l.b16 %v598
      %v607 = vpack.c.b16 %v604, %v603
      %v608 = vpack.c.b16 %v606, %v605
      %vm611 = vcmask 261120
      %v613 = vsel %vm611, %v594, 0
      %615 = vmatprep.subr.bf16.mxu0 0
      %616 = vmatpush1.bf16.msra.mxu0 0
      %617 = vmatprep.subr.bf16.mxu0 0
      %618 = vmatpush1.bf16.msra.mxu0 0
      %619 = vmatprep.subr.bf16.mxu0 0
      %620 = vmatpush1.bf16.msra.mxu0 0
      %621 = vmatprep.subr.bf16.mxu0 0
      %622 = vmatpush1.bf16.msra.mxu0 0
      %623 = vmatprep.subr.bf16.mxu0 0
      %624 = vmatpush1.bf16.msra.mxu0 0
      %625 = vmatprep.subr.bf16.mxu0 0
      %626 = vmatpush1.bf16.msra.mxu0 0
      %627 = vmatprep.subr.bf16.mxu0 0
      %628 = vmatpush1.bf16.msra.mxu0 %v608
      %629 = vmatprep.subr.bf16.mxu0 0
      %630 = vmatpush1.bf16.msra.mxu0 %v607
      %631 = vmatprep.subr.bf16.mxu0 0
      %632 = vmatpush2.bf16.msra.mxu0 0
      %633 = vmatprep.subr.bf16.mxu0 0
      %634 = vmatpush2.bf16.msra.mxu0 0
      %635 = vmatprep.subr.bf16.mxu0 0
      %636 = vmatpush2.bf16.msra.mxu0 0
      %637 = vmatprep.subr.bf16.mxu0 0
      %638 = vmatpush2.bf16.msra.mxu0 0
      %639 = vmatprep.subr.bf16.mxu0 0
      %640 = vmatpush2.bf16.msra.mxu0 0
      %641 = vmatprep.subr.bf16.mxu0 0
      %642 = vmatpush2.bf16.msra.mxu0 0
      %643 = vmatprep.subr.bf16.mxu0 0
      %644 = vmatpush2.bf16.msra.mxu0 0
      %645 = vmatprep.subr.bf16.mxu0 0
      %646 = vmatpush2.bf16.msra.mxu0 0
      %647 = vmatprep.mubr.bf16.mxu0 0
      %648 = vmatmul.mubr.bf16.gmra.mxu0 %v613
      %v649 = vpop.f32.mrf.mxu0
      %v650 = vadd.f32 0.0, %v649
      %v651 = vpop.f32.mrf.mxu0
      %v652 = vpop.f32.mrf.mxu0
      %v653 = vpop.f32.mrf.mxu0
      %654 = vdwg.mxu0
      %v657 = vunpack.c.l.b16 %v592
      %v658 = vunpack.c.l.b16 %v593
      %v659 = vpack.c.b16 %v658, %v657
      %vm661 = vcmask 130048
      %v663 = vsel %vm661, %v591, 0
      %665 = vmatprep.subr.bf16.mxu0 0
      %666 = vmatpush1.bf16.msra.mxu0 0
      %667 = vmatprep.subr.bf16.mxu0 0
      %668 = vmatpush1.bf16.msra.mxu0 0
      %669 = vmatprep.subr.bf16.mxu0 0
      %670 = vmatpush1.bf16.msra.mxu0 0
      %671 = vmatprep.subr.bf16.mxu0 0
      %672 = vmatpush1.bf16.msra.mxu0 0
      %673 = vmatprep.subr.bf16.mxu0 0
      %674 = vmatpush1.bf16.msra.mxu0 0
      %675 = vmatprep.subr.bf16.mxu0 0
      %676 = vmatpush1.bf16.msra.mxu0 0
      %677 = vmatprep.subr.bf16.mxu0 0
      %678 = vmatpush1.bf16.msra.mxu0 0
      %679 = vmatprep.subr.bf16.mxu0 0
      %680 = vmatpush1.bf16.msra.mxu0 %v659
      %681 = vmatprep.subr.bf16.mxu0 0
      %682 = vmatpush2.bf16.msra.mxu0 0
      %683 = vmatprep.subr.bf16.mxu0 0
      %684 = vmatpush2.bf16.msra.mxu0 0
      %685 = vmatprep.subr.bf16.mxu0 0
      %686 = vmatpush2.bf16.msra.mxu0 0
      %687 = vmatprep.subr.bf16.mxu0 0
      %688 = vmatpush2.bf16.msra.mxu0 0
      %689 = vmatprep.subr.bf16.mxu0 0
      %690 = vmatpush2.bf16.msra.mxu0 0
      %691 = vmatprep.subr.bf16.mxu0 0
      %692 = vmatpush2.bf16.msra.mxu0 0
      %693 = vmatprep.subr.bf16.mxu0 0
      %694 = vmatpush2.bf16.msra.mxu0 0
      %695 = vmatprep.subr.bf16.mxu0 0
      %696 = vmatpush2.bf16.msra.mxu0 0
      %697 = vmatprep.mubr.bf16.mxu0 0
      %698 = vmatmul.mubr.bf16.gmra.mxu0 %v663
      %v699 = vpop.f32.mrf.mxu0
      %v700 = vadd.f32 %v650, %v699
      %v701 = vpop.f32.mrf.mxu0
      %v702 = vpop.f32.mrf.mxu0
      %v703 = vpop.f32.mrf.mxu0
      %704 = vdwg.mxu0
      %v705 = vld [vmem:[%s6] sm:$0x1]
      %v707 = vlaneseq
      %v708 = vshrl.u32 %v707, 7
      %v709 = vsub.s32 0, %v708
      %v710 = vrot.slane %v705, %v709
      %v712 = vadd.f32 %v700, %v710
      %v713 = vmax.f32 %v712, 0.0
      %v714 = vpack.c.bf16 %v713, %v713
      %v715 = vld [vmem:[%s7] sm:$0xf]
      %v716 = vld [vmem:[%s7 + $0x4] sm:$0xf]
      %v717 = vld [vmem:[%s7 + $0x8] sm:$0xf]
      %v718 = vld [vmem:[%s7 + $0xc] sm:$0xf]
      %v719 = vld [vmem:[%s8] sm:$0x1]
      %v721 = vlaneseq
      %v722 = vshrl.u32 %v721, 7
      %v723 = vsub.s32 0, %v722
      %v724 = vrot.slane %v719, %v723
      %v730 = vunpack.c.l.b16 %v715
      %v731 = vunpack.c.l.b16 %v716
      %v732 = vunpack.c.l.b16 %v717
      %v733 = vunpack.c.l.b16 %v718
      %v734 = vpack.c.b16 %v731, %v730
      %v735 = vpack.c.b16 %v733, %v732
      %v739 = vsel %vm611, %v714, 0
      %741 = vmatprep.subr.bf16.mxu0 0
      %742 = vmatpush1.bf16.msra.mxu0 0
      %743 = vmatprep.subr.bf16.mxu0 0
      %744 = vmatpush1.bf16.msra.mxu0 0
      %745 = vmatprep.subr.bf16.mxu0 0
      %746 = vmatpush1.bf16.msra.mxu0 0
      %747 = vmatprep.subr.bf16.mxu0 0
      %748 = vmatpush1.bf16.msra.mxu0 0
      %749 = vmatprep.subr.bf16.mxu0 0
      %750 = vmatpush1.bf16.msra.mxu0 0
      %751 = vmatprep.subr.bf16.mxu0 0
      %752 = vmatpush1.bf16.msra.mxu0 0
      %753 = vmatprep.subr.bf16.mxu0 0
      %754 = vmatpush1.bf16.msra.mxu0 %v735
      %755 = vmatprep.subr.bf16.mxu0 0
      %756 = vmatpush1.bf16.msra.mxu0 %v734
      %757 = vmatprep.subr.bf16.mxu0 0
      %758 = vmatpush2.bf16.msra.mxu0 0
      %759 = vmatprep.subr.bf16.mxu0 0
      %760 = vmatpush2.bf16.msra.mxu0 0
      %761 = vmatprep.subr.bf16.mxu0 0
      %762 = vmatpush2.bf16.msra.mxu0 0
      %763 = vmatprep.subr.bf16.mxu0 0
      %764 = vmatpush2.bf16.msra.mxu0 0
      %765 = vmatprep.subr.bf16.mxu0 0
      %766 = vmatpush2.bf16.msra.mxu0 0
      %767 = vmatprep.subr.bf16.mxu0 0
      %768 = vmatpush2.bf16.msra.mxu0 0
      %769 = vmatprep.subr.bf16.mxu0 0
      %770 = vmatpush2.bf16.msra.mxu0 0
      %771 = vmatprep.subr.bf16.mxu0 0
      %772 = vmatpush2.bf16.msra.mxu0 0
      %773 = vmatprep.mubr.bf16.mxu0 0
      %774 = vmatmul.mubr.bf16.gmra.mxu0 %v739
      %v775 = vpop.f32.mrf.mxu0
      %v776 = vadd.f32 %v724, %v775
      %v777 = vpop.f32.mrf.mxu0
      %v778 = vpop.f32.mrf.mxu0
      %v779 = vpop.f32.mrf.mxu0
      %780 = vdwg.mxu0
      %v781 = vmax.f32 %v776, 0.0
      %v782 = vpack.c.bf16 %v781, %v781
      %v783 = vld [vmem:[%s9] sm:$0xf]
      %v784 = vld [vmem:[%s9 + $0x4] sm:$0xf]
      %v785 = vld [vmem:[%s9 + $0x8] sm:$0xf]
      %v786 = vld [vmem:[%s9 + $0xc] sm:$0xf]
      %v787 = vld [vmem:[%s10] sm:$0x1]
      %v789 = vlaneseq
      %v790 = vshrl.u32 %v789, 7
      %v791 = vsub.s32 0, %v790
      %v792 = vrot.slane %v787, %v791
      %v798 = vunpack.c.l.b16 %v783
      %v799 = vunpack.c.l.b16 %v784
      %v800 = vunpack.c.l.b16 %v785
      %v801 = vunpack.c.l.b16 %v786
      %v802 = vpack.c.b16 %v799, %v798
      %v803 = vpack.c.b16 %v801, %v800
      %v807 = vsel %vm611, %v782, 0
      %809 = vmatprep.subr.bf16.mxu0 0
      %810 = vmatpush1.bf16.msra.mxu0 0
      %811 = vmatprep.subr.bf16.mxu0 0
      %812 = vmatpush1.bf16.msra.mxu0 0
      %813 = vmatprep.subr.bf16.mxu0 0
      %814 = vmatpush1.bf16.msra.mxu0 0
      %815 = vmatprep.subr.bf16.mxu0 0
      %816 = vmatpush1.bf16.msra.mxu0 0
      %817 = vmatprep.subr.bf16.mxu0 0
      %818 = vmatpush1.bf16.msra.mxu0 0
      %819 = vmatprep.subr.bf16.mxu0 0
      %820 = vmatpush1.bf16.msra.mxu0 0
      %821 = vmatprep.subr.bf16.mxu0 0
      %822 = vmatpush1.bf16.msra.mxu0 %v803
      %823 = vmatprep.subr.bf16.mxu0 0
      %824 = vmatpush1.bf16.msra.mxu0 %v802
      %825 = vmatprep.subr.bf16.mxu0 0
      %826 = vmatpush2.bf16.msra.mxu0 0
      %827 = vmatprep.subr.bf16.mxu0 0
      %828 = vmatpush2.bf16.msra.mxu0 0
      %829 = vmatprep.subr.bf16.mxu0 0
      %830 = vmatpush2.bf16.msra.mxu0 0
      %831 = vmatprep.subr.bf16.mxu0 0
      %832 = vmatpush2.bf16.msra.mxu0 0
      %833 = vmatprep.subr.bf16.mxu0 0
      %834 = vmatpush2.bf16.msra.mxu0 0
      %835 = vmatprep.subr.bf16.mxu0 0
      %836 = vmatpush2.bf16.msra.mxu0 0
      %837 = vmatprep.subr.bf16.mxu0 0
      %838 = vmatpush2.bf16.msra.mxu0 0
      %839 = vmatprep.subr.bf16.mxu0 0
      %840 = vmatpush2.bf16.msra.mxu0 0
      %841 = vmatprep.mubr.bf16.mxu0 0
      %842 = vmatmul.mubr.bf16.gmra.mxu0 %v807
      %v843 = vpop.f32.mrf.mxu0
      %v844 = vadd.f32 %v792, %v843
      %v845 = vpop.f32.mrf.mxu0
      %v846 = vpop.f32.mrf.mxu0
      %v847 = vpop.f32.mrf.mxu0
      %848 = vdwg.mxu0
      %v849 = vmax.f32 %v844, 0.0
      %v850 = vpack.c.bf16 %v849, %v849
      %v851 = vld [vmem:[%s11] sm:$0xf]
      %v852 = vld [vmem:[%s11 + $0x4] sm:$0xf]
      %v853 = vld [vmem:[%s11 + $0x8] sm:$0xf]
      %v854 = vld [vmem:[%s11 + $0xc] sm:$0xf]
      %v855 = vld [vmem:[%s12] sm:$0x1]
      %v857 = vlaneseq
      %v858 = vshrl.u32 %v857, 7
      %v859 = vsub.s32 0, %v858
      %v860 = vrot.slane %v855, %v859
      %v866 = vunpack.c.l.b16 %v851
      %v867 = vunpack.c.l.b16 %v852
      %v868 = vunpack.c.l.b16 %v853
      %v869 = vunpack.c.l.b16 %v854
      %v870 = vpack.c.b16 %v867, %v866
      %v871 = vpack.c.b16 %v869, %v868
      %v875 = vsel %vm611, %v850, 0
      %877 = vmatprep.subr.bf16.mxu0 0
      %878 = vmatpush1.bf16.msra.mxu0 0
      %879 = vmatprep.subr.bf16.mxu0 0
      %880 = vmatpush1.bf16.msra.mxu0 0
      %881 = vmatprep.subr.bf16.mxu0 0
      %882 = vmatpush1.bf16.msra.mxu0 0
      %883 = vmatprep.subr.bf16.mxu0 0
      %884 = vmatpush1.bf16.msra.mxu0 0
      %885 = vmatprep.subr.bf16.mxu0 0
      %886 = vmatpush1.bf16.msra.mxu0 0
      %887 = vmatprep.subr.bf16.mxu0 0
      %888 = vmatpush1.bf16.msra.mxu0 0
      %889 = vmatprep.subr.bf16.mxu0 0
      %890 = vmatpush1.bf16.msra.mxu0 %v871
      %891 = vmatprep.subr.bf16.mxu0 0
      %892 = vmatpush1.bf16.msra.mxu0 %v870
      %893 = vmatprep.subr.bf16.mxu0 0
      %894 = vmatpush2.bf16.msra.mxu0 0
      %895 = vmatprep.subr.bf16.mxu0 0
      %896 = vmatpush2.bf16.msra.mxu0 0
      %897 = vmatprep.subr.bf16.mxu0 0
      %898 = vmatpush2.bf16.msra.mxu0 0
      %899 = vmatprep.subr.bf16.mxu0 0
      %900 = vmatpush2.bf16.msra.mxu0 0
      %901 = vmatprep.subr.bf16.mxu0 0
      %902 = vmatpush2.bf16.msra.mxu0 0
      %903 = vmatprep.subr.bf16.mxu0 0
      %904 = vmatpush2.bf16.msra.mxu0 0
      %905 = vmatprep.subr.bf16.mxu0 0
      %906 = vmatpush2.bf16.msra.mxu0 0
      %907 = vmatprep.subr.bf16.mxu0 0
      %908 = vmatpush2.bf16.msra.mxu0 0
      %909 = vmatprep.mubr.bf16.mxu0 0
      %910 = vmatmul.mubr.bf16.gmra.mxu0 %v875
      %v911 = vpop.f32.mrf.mxu0
      %v912 = vadd.f32 %v860, %v911
      %v913 = vpop.f32.mrf.mxu0
      %v914 = vpop.f32.mrf.mxu0
      %v915 = vpop.f32.mrf.mxu0
      %916 = vdwg.mxu0
      %918 = vset.pattern.permute.xlu0 0
      %919 = vperm.xlu0 %918, %v590
      %v920 = vpop.permute.xlu0 %919
      %v922 = vmul.f32 %v912, %v920
      %v923 = vsub.f32 1.0, %v590
      %v924 = vmul.f32 %v923, 1e-10
      %926 = vset.pattern.permute.xlu0 0
      %927 = vperm.xlu0 %926, %v924
      %v928 = vpop.permute.xlu0 %927
      %v930 = vadd.f32 %v922, %v928
      %vm931 = vcmask 64512
      %v932 = vsel %vm931, %v930, -inf
      %933 = vmax.xlane.f32.xlu0 %v932
      %v934 = vpop.xlane.xlu0 %933
      %v935 = vsub.f32 %v930, %v934
      %v936 = vmul.f32 %v935, 1.442695
      %v937 = vpow.pop %v936
      %v938 = vsel %vm931, %v937, 0.0
      %939 = vadd.xlane.f32.xlu0 %v938
      %v940 = vpop.xlane.xlu0 %939
      %v941 = vrcp.pop %v940
      %v942 = vmul.f32 %v937, %v941
      %v943 = vmul.f32 %v942, %v920
      %v944 = vld [vmem:[%s576] sm:$0xff]
      %v945 = vadd.f32 %v944, 1e-20
      %v946 = vlog2.pop %v945
      %v947 = vmul.f32 %v946, 0.6931472
      %v948 = vsub.f32 0.0, %v947
      %v949 = vadd.f32 %v948, 1e-20
      %v950 = vlog2.pop %v949
      %v951 = vmul.f32 %v950, 0.6931472
      %v952 = vsub.f32 0.0, %v951
      %v953 = vadd.f32 %v943, %v952
      %v954 = vmul.f32 %v953, 1.4285715
      %v955 = vsel %vm931, %v954, -inf
      %956 = vmax.xlane.f32.xlu0 %v955
      %v957 = vpop.xlane.xlu0 %956
      %v958 = vsub.f32 %v954, %v957
      %v959 = vmul.f32 %v958, 1.442695
      %v960 = vpow.pop %v959
      %v961 = vsel %vm931, %v960, 0.0
      %962 = vadd.xlane.f32.xlu0 %v961
      %v963 = vpop.xlane.xlu0 %962
      %v964 = vrcp.pop %v963
      %v965 = vmul.f32 %v960, %v964
      %v966 = vmul.f32 %v965, %v920
      %967 = vst.msk [vmem:[%s580] sm:$0xff] %vm931, %v943
      %968 = vst.msk [vmem:[%s584] sm:$0xff] %vm931, %v966
      %v969 = vld [vmem:[%s13] sm:$0xff]
      %v971 = vsel %vm931, %v966, 0
      %973 = vmatprep.subr.mxu0 0.0
      %974 = vmatpush1.msra.mxu0 0.0
      %975 = vmatprep.subr.mxu0 0.0
      %976 = vmatpush1.msra.mxu0 0.0
      %977 = vmatprep.subr.mxu0 0.0
      %978 = vmatpush1.msra.mxu0 0.0
      %979 = vmatprep.subr.mxu0 0.0
      %980 = vmatpush1.msra.mxu0 0.0
      %981 = vmatprep.subr.mxu0 0.0
      %982 = vmatpush1.msra.mxu0 0.0
      %983 = vmatprep.subr.mxu0 0.0
      %984 = vmatpush1.msra.mxu0 0.0
      %985 = vmatprep.subr.mxu0 0.0
      %986 = vmatpush1.msra.mxu0 0.0
      %987 = vmatprep.subr.mxu0 0.0
      %988 = vmatpush1.msra.mxu0 0.0
      %989 = vmatprep.subr.mxu0 0.0
      %990 = vmatpush1.msra.mxu0 0.0
      %991 = vmatprep.subr.mxu0 0.0
      %992 = vmatpush1.msra.mxu0 0.0
      %993 = vmatprep.subr.mxu0 0.0
      %994 = vmatpush1.msra.mxu0 0.0
      %995 = vmatprep.subr.mxu0 0.0
      %996 = vmatpush1.msra.mxu0 0.0
      %997 = vmatprep.subr.mxu0 0.0
      %998 = vmatpush1.msra.mxu0 0.0
      %999 = vmatprep.subr.mxu0 0.0
      %1000 = vmatpush1.msra.mxu0 0.0
      %1001 = vmatprep.subr.mxu0 0.0
      %1002 = vmatpush1.msra.mxu0 0.0
      %1003 = vmatprep.subr.mxu0 0.0
      %1004 = vmatpush1.msra.mxu0 %v969
      %1005 = vmatprep.subr.mxu0 0.0
      %1006 = vmatpush2.msra.mxu0 0.0
      %1007 = vmatprep.subr.mxu0 0.0
      %1008 = vmatpush2.msra.mxu0 0.0
      %1009 = vmatprep.subr.mxu0 0.0
      %1010 = vmatpush2.msra.mxu0 0.0
      %1011 = vmatprep.subr.mxu0 0.0
      %1012 = vmatpush2.msra.mxu0 0.0
      %1013 = vmatprep.subr.mxu0 0.0
      %1014 = vmatpush2.msra.mxu0 0.0
      %1015 = vmatprep.subr.mxu0 0.0
      %1016 = vmatpush2.msra.mxu0 0.0
      %1017 = vmatprep.subr.mxu0 0.0
      %1018 = vmatpush2.msra.mxu0 0.0
      %1019 = vmatprep.subr.mxu0 0.0
      %1020 = vmatpush2.msra.mxu0 0.0
      %1021 = vmatprep.subr.mxu0 0.0
      %1022 = vmatpush2.msra.mxu0 0.0
      %1023 = vmatprep.subr.mxu0 0.0
      %1024 = vmatpush2.msra.mxu0 0.0
      %1025 = vmatprep.subr.mxu0 0.0
      %1026 = vmatpush2.msra.mxu0 0.0
      %1027 = vmatprep.subr.mxu0 0.0
      %1028 = vmatpush2.msra.mxu0 0.0
      %1029 = vmatprep.subr.mxu0 0.0
      %1030 = vmatpush2.msra.mxu0 0.0
      %1031 = vmatprep.subr.mxu0 0.0
      %1032 = vmatpush2.msra.mxu0 0.0
      %1033 = vmatprep.subr.mxu0 0.0
      %1034 = vmatpush2.msra.mxu0 0.0
      %1035 = vmatprep.subr.mxu0 0.0
      %1036 = vmatpush2.msra.mxu0 0.0
      %1037 = vmatprep.mubr.f32.mxu0 0.0
      %1038 = vmatmul.mubr.f32.gmra.mxu0 %v971
      %v1039 = vpop.f32.mrf.mxu0
      %v1040 = vadd.f32 0.0, %v1039
      %v1041 = vpop.f32.mrf.mxu0
      %1042 = vdwg.mxu0
      %v1043 = vmul.f32 %v1040, %v920
      %1044 = vst.msk [vmem:[%s588] sm:$0xff] %vm661, %v1043
      %p1045 = scmp.lt.s32.totalorder %s28, 2
      %s1046 = scalar_select %p1045, %s28, 2
      %s1047 = smul.addr %s1046, 8
      %s1048 = scalar_lea.vmem %s14, %s1047
      %p1049 = scmp.lt.s32.totalorder %s28, 2
      %s1050 = scalar_select %p1049, %s28, 2
      %s1051 = smul.addr %s1050, 8
      %s1052 = scalar_lea.vmem %s15, %s1051
      %p1053 = scmp.lt.s32.totalorder %s28, 2
      %s1054 = scalar_select %p1053, %s28, 2
      %s1055 = smul.addr %s1054, 8
      %s1056 = scalar_lea.vmem %s16, %s1055
      // Predicated region
      $region77: #{tpu_custom_call.1} parent=75 // pred_check
        %p1057 = pneg %p360
      $region78: #{tpu_custom_call.1} parent=75 // pred_check_branch
        %1059 = sbr.rel (%p1057) target = $region80
      $region79: #{tpu_custom_call.1} parent=75 // pred_region
        _
      $region80: #{tpu_custom_call.1} parent=75 // pred_fallthru
        _
      // Predicated region
      $region81: #{tpu_custom_call.1} parent=75 // pred_check
        %p1060 = pneg %p386
      $region82: #{tpu_custom_call.1} parent=75 // pred_check_branch
        %1062 = sbr.rel (%p1060) target = $region84
      $region83: #{tpu_custom_call.1} parent=75 // pred_region
        _
      $region84: #{tpu_custom_call.1} parent=75 // pred_fallthru
        _
      // Predicated region
      $region85: #{tpu_custom_call.1} parent=75 // pred_check
        %p1063 = pneg %p412
      $region86: #{tpu_custom_call.1} parent=75 // pred_check_branch
        %1065 = sbr.rel (%p1063) target = $region88
      $region87: #{tpu_custom_call.1} parent=75 // pred_region
        _
      $region88: #{tpu_custom_call.1} parent=75 // pred_fallthru
        _
    $region76: #{tpu_custom_call.1} parent=5 // pred_fallthru
      _
    %p1066 = scmp.le.s32.totalorder 2, %s23
    // Predicated region
    $region89: #{tpu_custom_call.1} parent=5 // pred_check
      %p1067 = pneg %p1066
    $region90: #{tpu_custom_call.1} parent=5 // pred_check_branch
      %1069 = sbr.rel (%p1067) target = $region92
    $region91: #{tpu_custom_call.1} parent=5 // pred_region
      %s1070 = ssub.s32 %s23, 2
      // Predicated region
      $region93: #{tpu_custom_call.1} parent=91 // pred_check
        %p1071 = pneg %p366
      $region94: #{tpu_custom_call.1} parent=91 // pred_check_branch
        %1073 = sbr.rel (%p1071) target = $region96
      $region95: #{tpu_custom_call.1} parent=91 // pred_region
        %p1074 = scmp.lt.s32.totalorder %s29, 2
        %s1075 = scalar_select %p1074, %s29, 2
        %s1076 = smul.addr %s1075, 8
        %s1077 = scalar_lea.vmem %s14, %s1076
      $region96: #{tpu_custom_call.1} parent=91 // pred_fallthru
        _
      // Predicated region
      $region97: #{tpu_custom_call.1} parent=91 // pred_check
        %p1078 = pneg %p392
      $region98: #{tpu_custom_call.1} parent=91 // pred_check_branch
        %1080 = sbr.rel (%p1078) target = $region100
      $region99: #{tpu_custom_call.1} parent=91 // pred_region
        %p1081 = scmp.lt.s32.totalorder %s29, 2
        %s1082 = scalar_select %p1081, %s29, 2
        %s1083 = smul.addr %s1082, 8
        %s1084 = scalar_lea.vmem %s15, %s1083
      $region100: #{tpu_custom_call.1} parent=91 // pred_fallthru
        _
      // Predicated region
      $region101: #{tpu_custom_call.1} parent=91 // pred_check
        %p1085 = pneg %p418
      $region102: #{tpu_custom_call.1} parent=91 // pred_check_branch
        %1087 = sbr.rel (%p1085) target = $region104
      $region103: #{tpu_custom_call.1} parent=91 // pred_region
        %p1088 = scmp.lt.s32.totalorder %s29, 2
        %s1089 = scalar_select %p1088, %s29, 2
        %s1090 = smul.addr %s1089, 8
        %s1091 = scalar_lea.vmem %s16, %s1090
      $region104: #{tpu_custom_call.1} parent=91 // pred_fallthru
        _
    $region92: #{tpu_custom_call.1} parent=5 // pred_fallthru
      _
  $region6: #{tpu_custom_call.1} parent=0 // loop_footer
    %s27 = sadd.s32 1, %s23
  $region7: #{tpu_custom_call.1} parent=0 // loop_footer_branch
    %22 = sbr.rel target = $region3
  $region8: #{tpu_custom_call.1} parent=0 // loop_exit
    _

</llo_original>
